<compile_context>
chip_gen: v6e
topology: v6e:2x2x1
jax: 0.10.0
libtpu: 0.0.40
codegen_flags: <defaults>
</compile_context>

<pallas_src>
import numpy as np
import jax
import jax.numpy as jnp
from jax.experimental import pallas as pl
from jax.experimental.pallas import tpu as pltpu


# ---------------------------------------------------------------------------
# Glue: patch extraction (equivalent to PatchExtractor.forward)
# ---------------------------------------------------------------------------
def extract_patches(x, patch_size):
    """x: (B, C, H, W) -> (B, n_patches, C*p*p), matching torch unfold order."""
    B, C, H, W = x.shape
    assert H % patch_size == 0 and W % patch_size == 0
    hp, wp = H // patch_size, W // patch_size
    x = x.reshape(B, C, hp, patch_size, wp, patch_size)
    # -> (B, hp, wp, C, p, p)  (same as torch permute(0, 2, 3, 1, 4, 5))
    x = jnp.transpose(x, (0, 2, 4, 1, 3, 5))
    return x.reshape(B, hp * wp, C * patch_size * patch_size)


# ---------------------------------------------------------------------------
# Glue: sinusoidal positional encoding (same formula as _get_pos_enc)
# ---------------------------------------------------------------------------
def get_pos_enc(seq_len, d, n=10000):
    k = np.arange(seq_len, dtype=np.float64)[:, None]
    i = np.arange(d // 2, dtype=np.float64)[None, :]
    denom = n ** (2.0 * i / d)
    pe = np.zeros((seq_len, d), dtype=np.float64)
    pe[:, 0::2] = np.sin(k / denom)
    pe[:, 1::2] = np.cos(k / denom)
    return jnp.asarray(pe, dtype=jnp.float32)


def _round_up(x, m):
    return (x + m - 1) // m * m


# ---------------------------------------------------------------------------
# Pallas kernel: (TN, K) @ (K, Dp) on the MXU + bias + pos-enc, f32 epilogue
# ---------------------------------------------------------------------------
def embed_kernel(patches_ref, w_ref, b_ref, pos_ref, out_ref):
    # patches_ref: (TN, K)   compute dtype (bf16)
    # w_ref:       (K, Dp)   compute dtype (bf16)
    # b_ref:       (1, Dp)   f32
    # pos_ref:     (TN, Dp)  f32
    # out_ref:     (TN, Dp)  f32
    proj = jnp.dot(patches_ref[...], w_ref[...],
                   preferred_element_type=jnp.float32)
    out_ref[...] = (proj + b_ref[...] + pos_ref[...]).astype(out_ref.dtype)


def input_embeddings(x, weight_t, bias, class_tokens, patch_size, latent_dim,
                     compute_dtype=jnp.bfloat16):
    """
    x:            (B, 3, H, W)          float32 (NCHW, like PyTorch)
    weight_t:     (in_dim, latent_dim)  float32 (nn.Linear weight, transposed)
    bias:         (latent_dim,)         float32
    class_tokens: (B, 1, latent_dim)    float32
    returns:      (B, n_patches + 1, latent_dim) float32
    """
    B = x.shape[0]
    D = latent_dim

    patches = extract_patches(x, patch_size)                # (B, N, K)
    _, N, K = patches.shape

    # --- choose lane/sublane-aligned tiles ------------------------------
    D_pad = _round_up(D, 128)                               # lane-dense output
    TN = 256 if N >= 256 else _round_up(N, 16)              # token tile (sublanes)
    N_pad = _round_up(N, TN)
    num_tiles = N_pad // TN

    # --- pad / cast operands (no-ops when already aligned) ---------------
    patches_p = patches
    if N_pad != N:
        patches_p = jnp.pad(patches_p, ((0, 0), (0, N_pad - N), (0, 0)))
    patches_p = patches_p.astype(compute_dtype)             # MXU input

    w = weight_t
    b2 = bias.reshape(1, D)
    if D_pad != D:
        w = jnp.pad(w, ((0, 0), (0, D_pad - D)))
        b2 = jnp.pad(b2, ((0, 0), (0, D_pad - D)))
    w = w.astype(compute_dtype)                             # MXU input
    b2 = b2.astype(jnp.float32)                             # f32 epilogue

    pos = get_pos_enc(N + 1, D)                             # (N+1, D) f32
    pos_patch = pos[:N]                                     # rows for patches
    if N_pad != N or D_pad != D:
        pos_patch = jnp.pad(pos_patch, ((0, N_pad - N), (0, D_pad - D)))

    out = pl.pallas_call(
        embed_kernel,
        out_shape=jax.ShapeDtypeStruct((B, N_pad, D_pad), jnp.float32),
        grid_spec=pltpu.PrefetchScalarGridSpec(
            num_scalar_prefetch=0,
            grid=(B, num_tiles),
            in_specs=[
                pl.BlockSpec((None, TN, K), lambda b, t: (b, t, 0)),   # patches
                pl.BlockSpec((K, D_pad), lambda b, t: (0, 0)),         # weight^T
                pl.BlockSpec((1, D_pad), lambda b, t: (0, 0)),         # bias
                pl.BlockSpec((TN, D_pad), lambda b, t: (t, 0)),        # pos enc
            ],
            out_specs=pl.BlockSpec((None, TN, D_pad), lambda b, t: (b, t, 0)),
        ),
        compiler_params=pltpu.CompilerParams(
            dimension_semantics=("parallel", "parallel")),
    )(patches_p, w, b2, pos_patch)

    # Strip padding and append the class token (row N of the pos encoding),
    # exactly like torch.cat((embedding, class_tokens), dim=1) + pos_enc.
    patch_emb = out[:, :N, :D]                               # (B, N, D)
    cls_row = class_tokens + pos[N][None, None, :]           # (B, 1, D) f32
    return jnp.concatenate([patch_emb, cls_row], axis=1)     # (B, N+1, D)


# ---------------------------------------------------------------------------
# Pure-JAX f32 reference for correctness checking
# ---------------------------------------------------------------------------
def reference(x, weight_t, bias, class_tokens, patch_size, latent_dim):
    patches = extract_patches(x, patch_size)
    emb = patches @ weight_t + bias
    N = emb.shape[1]
    pos = get_pos_enc(N + 1, latent_dim)[None, :, :]
    emb = jnp.concatenate([emb, class_tokens], axis=1)
    return emb + pos


if __name__ == "__main__":
    # Small config consistent with the module
    batch = 2
    channels = 3          # in_dim = patch_size**2 * 3 hard-codes 3 channels
    height = width = 16
    patch_size = 4
    latent_dim = 32
    in_dim = patch_size * patch_size * channels       # 48

    key = jax.random.PRNGKey(0)
    k_x, k_w, k_b, k_c = jax.random.split(key, 4)

    x = jax.random.normal(k_x, (batch, channels, height, width), jnp.float32)

    # nn.Linear(in_dim, latent_dim): weight (D, in_dim) ~ U(-1/sqrt(in), 1/sqrt(in))
    bound = 1.0 / np.sqrt(in_dim)
    weight = jax.random.uniform(k_w, (latent_dim, in_dim), jnp.float32,
                                minval=-bound, maxval=bound)
    bias = jax.random.uniform(k_b, (latent_dim,), jnp.float32,
                              minval=-bound, maxval=bound)
    weight_t = weight.T                                # (in_dim, D) for kernel

    # class_tokens: nn.Parameter(torch.randn(batch, 1, D))
    class_tokens = jax.random.normal(k_c, (batch, 1, latent_dim), jnp.float32)

    out = input_embeddings(x, weight_t, bias, class_tokens,
                           patch_size, latent_dim)
    out = jax.block_until_ready(out)

    ref = reference(x, weight_t, bias, class_tokens, patch_size, latent_dim)
    # bf16 MXU inputs -> slightly looser tolerance than pure f32.
    np.testing.assert_allclose(np.asarray(out), np.asarray(ref),
                               rtol=1e-2, atol=1e-2)
    assert out.shape == (batch,
                         (height // patch_size) * (width // patch_size) + 1,
                         latent_dim)
    print("KERNEL_OK")
</pallas_src>

<mosaic_0001>
module attributes {stable_mosaic.version = 11 : i64} {
  func.func @embed_kernel(%arg0: i32, %arg1: i32, %arg2: memref<1x16x48xbf16, #tpu.memory_space<vmem>>, %arg3: memref<48x128xbf16, #tpu.memory_space<vmem>>, %arg4: memref<1x128xf32, #tpu.memory_space<vmem>>, %arg5: memref<16x128xf32, #tpu.memory_space<vmem>>, %arg6: memref<1x16x128xf32, #tpu.memory_space<vmem>>) attributes {dimension_semantics = [#tpu.dimension_semantics<parallel>, #tpu.dimension_semantics<parallel>], iteration_bounds = array<i64: 2, 1>, scalar_prefetch = 0 : i64, scratch_operands = 0 : i64, tpu.core_type = #tpu.core_type<tc>, window_params = [{transform_indices = @transform_0, window_bounds = array<i64: 1, 16, 48>}, {pipeline_mode = #tpu.pipeline_mode<synchronous>, transform_indices = @transform_1, window_bounds = array<i64: 48, 128>}, {pipeline_mode = #tpu.pipeline_mode<synchronous>, transform_indices = @transform_2, window_bounds = array<i64: 1, 128>}, {transform_indices = @transform_3, window_bounds = array<i64: 16, 128>}, {transform_indices = @transform_4, window_bounds = array<i64: 1, 16, 128>}]} {
    %c0 = arith.constant 0 : index
    %c0_0 = arith.constant 0 : index
    %c0_1 = arith.constant 0 : index
    %0 = vector.load %arg2[%c0, %c0_0, %c0_1] : memref<1x16x48xbf16, #tpu.memory_space<vmem>>, vector<1x16x48xbf16>
    %1 = vector.shape_cast %0 : vector<1x16x48xbf16> to vector<16x48xbf16>
    %c0_2 = arith.constant 0 : index
    %c0_3 = arith.constant 0 : index
    %2 = vector.load %arg3[%c0_2, %c0_3] : memref<48x128xbf16, #tpu.memory_space<vmem>>, vector<48x128xbf16>
    %cst = arith.constant dense<0.000000e+00> : vector<16x128xf32>
    %3 = tpu.matmul %1, %2, %cst {dimension_numbers = #tpu.dot_dimension_numbers<[1], [0], [0], [1], [0, 0, 1, 1], [], []>} : vector<16x48xbf16>, vector<48x128xbf16>, vector<16x128xf32> -> vector<16x128xf32>
    %c0_4 = arith.constant 0 : index
    %c0_5 = arith.constant 0 : index
    %4 = vector.load %arg4[%c0_4, %c0_5] : memref<1x128xf32, #tpu.memory_space<vmem>>, vector<1x128xf32>
    %5 = vector.broadcast %4 : vector<1x128xf32> to vector<16x128xf32>
    %6 = arith.addf %3, %5 : vector<16x128xf32>
    %c0_6 = arith.constant 0 : index
    %c0_7 = arith.constant 0 : index
    %7 = vector.load %arg5[%c0_6, %c0_7] : memref<16x128xf32, #tpu.memory_space<vmem>>, vector<16x128xf32>
    %8 = arith.addf %6, %7 : vector<16x128xf32>
    %c0_8 = arith.constant 0 : index
    %c0_9 = arith.constant 0 : index
    %c0_10 = arith.constant 0 : index
    %9 = vector.load %arg6[%c0_8, %c0_9, %c0_10] : memref<1x16x128xf32, #tpu.memory_space<vmem>>, vector<1x16x128xf32>
    %10 = vector.shape_cast %9 : vector<1x16x128xf32> to vector<16x128xf32>
    %11 = vector.shape_cast %8 : vector<16x128xf32> to vector<1x16x128xf32>
    tpu.vector_store %arg6[%c0_8, %c0_9, %c0_10], %11 {strides = array<i32>} : memref<1x16x128xf32, #tpu.memory_space<vmem>>, vector<1x16x128xf32>,
    return
  }
  func.func @transform_0(%arg0: i32, %arg1: i32) -> (i32, i32, i32) {
    %c0_i32 = arith.constant 0 : i32
    %c0_i32_0 = arith.constant 0 : i32
    return %arg0, %arg1, %c0_i32 : i32, i32, i32
  }
  func.func @transform_1(%arg0: i32, %arg1: i32) -> (i32, i32) {
    %c0_i32 = arith.constant 0 : i32
    %c0_i32_0 = arith.constant 0 : i32
    %c0_i32_1 = arith.constant 0 : i32
    return %c0_i32, %c0_i32_0 : i32, i32
  }
  func.func @transform_2(%arg0: i32, %arg1: i32) -> (i32, i32) {
    %c0_i32 = arith.constant 0 : i32
    %c0_i32_0 = arith.constant 0 : i32
    %c0_i32_1 = arith.constant 0 : i32
    return %c0_i32, %c0_i32_0 : i32, i32
  }
  func.func @transform_3(%arg0: i32, %arg1: i32) -> (i32, i32) {
    %c0_i32 = arith.constant 0 : i32
    %c0_i32_0 = arith.constant 0 : i32
    return %arg1, %c0_i32 : i32, i32
  }
  func.func @transform_4(%arg0: i32, %arg1: i32) -> (i32, i32, i32) {
    %c0_i32 = arith.constant 0 : i32
    %c0_i32_0 = arith.constant 0 : i32
    return %arg0, %arg1, %c0_i32 : i32, i32, i32
  }
}

</mosaic_0001>

<llo_original>
// kernel: tpu_custom_call.1
$region0: #{tpu_custom_call.1}
  #allocation0 [shape = 'u32[]', space=smem, size = 0x4, offset = 0x4, fixed_abs, tag = 'smem constant byte address 0x4 - core index']
  #allocation1 [shape = 'u32[144,128]{1,0:T(1,128)}', space=vmem, size = 0x12000, scoped, tag = 'internal scratch']
  %s0 = inlined_call_operand.hbm [shape: bf16[2,16,48], index: 0, kind: input, shape index: {}]
  %s1 = inlined_call_operand.hbm [shape: bf16[48,128], index: 1, kind: input, shape index: {}]
  %s2 = inlined_call_operand.vmem [shape: f32[1,128], index: 2, kind: input, shape index: {}]
  %s3 = inlined_call_operand.hbm [shape: f32[16,128], index: 3, kind: input, shape index: {}]
  %s4 = inlined_call_operand.hbm [shape: f32[2,16,128], index: 4, kind: output, shape index: {}]
  %s5 = sld [smem:[#allocation0]]
  $region61: #{tpu_custom_call.1} parent=0
    _
  %s7 = ssub.s32 1, %s5
  %s8 = scalar_select 0, %s7, %s5
  $region1: #{tpu_custom_call.1} parent=0
    #allocation2 [shape = 'u8[8192]{0}', space=vmem, size = 0x2000, scoped, tag = 'input window, operand 0']
    #allocation3 [shape = 's32[2]{0}', space=sflag, size = 0x8, scoped, tag = 'scoped memory for tpu_custom_call.1']
    #allocation4 [shape = 's32[2]{0}', space=sflag, size = 0x8, scoped, tag = 'scoped memory for tpu_custom_call.1']
    #allocation5 [shape = 'u8[12288]{0}', space=vmem, size = 0x3000, scoped, tag = 'input window, operand 1, single buffered']
    #allocation6 [shape = 's32[1]{0}', space=sflag, size = 0x4, scoped, tag = 'scoped memory for tpu_custom_call.1']
    #allocation7 [shape = 'u8[8192]{0}', space=vmem, size = 0x2000, scoped, tag = 'input window, operand 3, single buffered']
    #allocation8 [shape = 'u8[16384]{0}', space=vmem, size = 0x4000, scoped, tag = 'output window, operand 0']
    %9 = vsyncpa [#allocation3], 0
    %s10 = scalar_lea.sflag [#allocation3], 1
    %11 = vsyncpa %s10, 0
    %12 = vsyncpa [#allocation6], 0
    %13 = vsyncpa [#allocation4], 0
    %s14 = scalar_lea.sflag [#allocation4], 1
    %15 = vsyncpa %s14, 0
    loop: start=0, step=1, limit=4
    $region2: #{tpu_custom_call.1} parent=1 // loop_pre_header
      _
    $region3: #{tpu_custom_call.1} parent=1 // loop_header
      %s17 = sphi 0, %s21
      %p18 = scmp.ge.s32.totalorder %s17, 4
      %s24 = sphi 0, %s36
      %s25 = sphi 0, %s32
      %s26 = sphi 0, %s24
      %s27 = sphi 0, %s25
      %s28 = sphi 0, %s26
      %s29 = sphi 0, %s27
      %s41 = sphi 0, %s43
      %s44 = sphi 0, %s41
      %s45 = sphi 0, %s44
      %s61 = sphi 0, %s45
      %s65 = sphi 0, %s65
      %s67 = sphi 0, %s65
      %s68 = sphi 0, %s67
      %s82 = sphi 0, %s68
      %s86 = sphi 0, %s86
      %s88 = sphi 0, %s86
      %s89 = sphi 0, %s88
      %s103 = sphi 0, %s89
      %s109 = sphi 0, %s111
      %s112 = sphi 0, %s109
      %s113 = sphi 0, %s112
      %s129 = sphi 0, %s113
      %s137 = sphi 0, %s139
      %s140 = sphi 0, %s137
      %s141 = sphi 0, %s140
      %s157 = sphi 0, %s141
    $region4: #{tpu_custom_call.1} parent=1 // loop_header_branch
      %20 = sbr.rel (%p18) target = $region8
    $region5: #{tpu_custom_call.1} parent=1 // loop_body
      %s22 = ssub.s32 %s17, 1
      %s23 = ssub.s32 %s17, 2
      %s30 = sadd.s32 1, %s25
      %p31 = scmp.ge.s32.totalorder %s30, 1
      %s32 = scalar_select %p31, 0, %s30
      %s33 = sadd.s32 1, %s24
      %s34 = scalar_select %p31, %s33, %s24
      %p35 = scmp.ge.s32.totalorder %s34, 2
      %s36 = scalar_select %p35, 0, %s34
      %s37 = ssub.s32 %s24, %s36
      %s38 = ssub.s32 %s25, %s32
      %s39 = sor.u32 %s37, %s38
      %p40 = scmp.eq.s32.totalorder %s39, 0
      %s42 = sadd.s32 %s41, 1
      %s43 = scalar_select %p40, %s41, %s42
      %p46 = pneg %p40
      %p47 = scmp.eq.s32.totalorder %s17, 1
      %p48 = por %p46, %p47
      %p49 = scmp.ne.s32.totalorder %s41, %s44
      %p50 = scmp.eq.s32.totalorder %s17, 0
      %p51 = por %p49, %p50
      %p52 = scmp.ne.s32.totalorder %s41, %s44
      %p53 = scmp.eq.s32.totalorder %s22, 1
      %p54 = por %p52, %p53
      %p55 = scmp.ne.s32.totalorder %s44, %s45
      %p56 = scmp.eq.s32.totalorder %s22, 0
      %p57 = por %p55, %p56
      %p58 = scmp.ne.s32.totalorder %s44, %s45
      %p59 = scmp.eq.s32.totalorder %s23, 1
      %p60 = por %p58, %p59
      %p62 = scmp.ne.s32.totalorder %s45, %s61
      %p63 = scmp.eq.s32.totalorder %s23, 0
      %p64 = por %p62, %p63
      %s66 = sadd.s32 %s65, 1
      %p69 = scmp.eq.s32.totalorder %s17, 1
      %p70 = scmp.ne.s32.totalorder %s65, %s67
      %p71 = scmp.eq.s32.totalorder %s17, 0
      %p72 = por %p70, %p71
      %p73 = scmp.ne.s32.totalorder %s65, %s67
      %p74 = scmp.eq.s32.totalorder %s22, 1
      %p75 = por %p73, %p74
      %p76 = scmp.ne.s32.totalorder %s67, %s68
      %p77 = scmp.eq.s32.totalorder %s22, 0
      %p78 = por %p76, %p77
      %p79 = scmp.ne.s32.totalorder %s67, %s68
      %p80 = scmp.eq.s32.totalorder %s23, 1
      %p81 = por %p79, %p80
      %p83 = scmp.ne.s32.totalorder %s68, %s82
      %p84 = scmp.eq.s32.totalorder %s23, 0
      %p85 = por %p83, %p84
      %s87 = sadd.s32 %s86, 1
      %p90 = scmp.eq.s32.totalorder %s17, 1
      %p91 = scmp.ne.s32.totalorder %s86, %s88
      %p92 = scmp.eq.s32.totalorder %s17, 0
      %p93 = por %p91, %p92
      %p94 = scmp.ne.s32.totalorder %s86, %s88
      %p95 = scmp.eq.s32.totalorder %s22, 1
      %p96 = por %p94, %p95
      %p97 = scmp.ne.s32.totalorder %s88, %s89
      %p98 = scmp.eq.s32.totalorder %s22, 0
      %p99 = por %p97, %p98
      %p100 = scmp.ne.s32.totalorder %s88, %s89
      %p101 = scmp.eq.s32.totalorder %s23, 1
      %p102 = por %p100, %p101
      %p104 = scmp.ne.s32.totalorder %s89, %s103
      %p105 = scmp.eq.s32.totalorder %s23, 0
      %p106 = por %p104, %p105
      %s107 = ssub.s32 %s25, %s32
      %p108 = scmp.eq.s32.totalorder %s107, 0
      %s110 = sadd.s32 %s109, 1
      %s111 = scalar_select %p108, %s109, %s110
      %p114 = pneg %p108
      %p115 = scmp.eq.s32.totalorder %s17, 1
      %p116 = por %p114, %p115
      %p117 = scmp.ne.s32.totalorder %s109, %s112
      %p118 = scmp.eq.s32.totalorder %s17, 0
      %p119 = por %p117, %p118
      %p120 = scmp.ne.s32.totalorder %s109, %s112
      %p121 = scmp.eq.s32.totalorder %s22, 1
      %p122 = por %p120, %p121
      %p123 = scmp.ne.s32.totalorder %s112, %s113
      %p124 = scmp.eq.s32.totalorder %s22, 0
      %p125 = por %p123, %p124
      %p126 = scmp.ne.s32.totalorder %s112, %s113
      %p127 = scmp.eq.s32.totalorder %s23, 1
      %p128 = por %p126, %p127
      %p130 = scmp.ne.s32.totalorder %s113, %s129
      %p131 = scmp.eq.s32.totalorder %s23, 0
      %p132 = por %p130, %p131
      %s133 = ssub.s32 %s24, %s36
      %s134 = ssub.s32 %s25, %s32
      %s135 = sor.u32 %s133, %s134
      %p136 = scmp.eq.s32.totalorder %s135, 0
      %s138 = sadd.s32 %s137, 1
      %s139 = scalar_select %p136, %s137, %s138
      %p142 = pneg %p136
      %p143 = scmp.eq.s32.totalorder %s17, 1
      %p144 = por %p142, %p143
      %p145 = scmp.ne.s32.totalorder %s137, %s140
      %p146 = scmp.eq.s32.totalorder %s17, 0
      %p147 = por %p145, %p146
      %p148 = scmp.ne.s32.totalorder %s137, %s140
      %p149 = scmp.eq.s32.totalorder %s22, 1
      %p150 = por %p148, %p149
      %p151 = scmp.ne.s32.totalorder %s140, %s141
      %p152 = scmp.eq.s32.totalorder %s22, 0
      %p153 = por %p151, %p152
      %p154 = scmp.ne.s32.totalorder %s140, %s141
      %p155 = scmp.eq.s32.totalorder %s23, 1
      %p156 = por %p154, %p155
      %p158 = scmp.ne.s32.totalorder %s141, %s157
      %p159 = scmp.eq.s32.totalorder %s23, 0
      %p160 = por %p158, %p159
      %p161 = scmp.le.s32.totalorder 1, %s17
      %p162 = scmp.lt.s32.totalorder %s17, 3
      %p163 = pnand %p161, %p162
      %p164 = pneg %p163
      // Predicated region
      $region9: #{tpu_custom_call.1} parent=5 // pred_check
        _
      $region10: #{tpu_custom_call.1} parent=5 // pred_check_branch
        %166 = sbr.rel (%p163) target = $region12
      $region11: #{tpu_custom_call.1} parent=5 // pred_region
        %s167 = ssub.s32 %s17, 1
        // Predicated region
        $region13: #{tpu_custom_call.1} parent=11 // pred_check
          %p168 = pneg %p78
        $region14: #{tpu_custom_call.1} parent=11 // pred_check_branch
          %170 = sbr.rel (%p168) target = $region16
        $region15: #{tpu_custom_call.1} parent=11 // pred_region
          %s172 = ssub.s32 384, 384
          %173 = vsyncadd [#allocation6], %s172
          %s174 = sshll.u32 [#allocation5], 4
          %s175 = int_to_ptr.vmem [resolvable:$true] %s174
          %180 = dma.hbm_to_vmem [thread:$0]  %s1, 384, %s175, [#allocation6], 64, 64, 4
        $region16: #{tpu_custom_call.1} parent=11 // pred_fallthru
          _
        // Predicated region
        $region17: #{tpu_custom_call.1} parent=11 // pred_check
          %p181 = pneg %p99
        $region18: #{tpu_custom_call.1} parent=11 // pred_check_branch
          %183 = sbr.rel (%p181) target = $region20
        $region19: #{tpu_custom_call.1} parent=11 // pred_region
          _
        $region20: #{tpu_custom_call.1} parent=11 // pred_fallthru
          _
        // Predicated region
        $region21: #{tpu_custom_call.1} parent=11 // pred_check
          %p184 = pneg %p125
        $region22: #{tpu_custom_call.1} parent=11 // pred_check_branch
          %186 = sbr.rel (%p184) target = $region24
        $region23: #{tpu_custom_call.1} parent=11 // pred_region
          %s187 = smul.u32 2, %s27
          %s189 = ssub.s32 256, 256
          %190 = vsyncadd [#allocation6], %s189
          %s191 = smul.addr %s187, 128
          %s192 = scalar_lea.hbm %s3, %s191
          %s193 = sshll.u32 [#allocation7], 4
          %s194 = int_to_ptr.vmem [resolvable:$true] %s193
          %199 = dma.hbm_to_vmem [thread:$0]  %s192, 256, %s194, [#allocation6], 128, 128, 8
        $region24: #{tpu_custom_call.1} parent=11 // pred_fallthru
          _
      $region12: #{tpu_custom_call.1} parent=5 // pred_fallthru
        _
      %p200 = scmp.lt.s32.totalorder %s17, 2
      // Predicated region
      $region25: #{tpu_custom_call.1} parent=5 // pred_check
        %p201 = pneg %p200
      $region26: #{tpu_custom_call.1} parent=5 // pred_check_branch
        %203 = sbr.rel (%p201) target = $region28
      $region27: #{tpu_custom_call.1} parent=5 // pred_region
        // Predicated region
        $region29: #{tpu_custom_call.1} parent=27 // pred_check
          %p204 = pneg %p51
        $region30: #{tpu_custom_call.1} parent=27 // pred_check_branch
          %206 = sbr.rel (%p204) target = $region32
        $region31: #{tpu_custom_call.1} parent=27 // pred_region
          %s207 = sand.u32 %s41, 1
          %s208 = scalar_lea.sflag [#allocation3], %s207
          %s209 = sand.u32 %s41, 1
          %s210 = smul.addr %s209, 8
          %s211 = scalar_lea.vmem [#allocation2], %s210
          %s212 = smul.u32 2, %s25
          %s214 = ssub.s32 128, 128
          %215 = vsyncadd %s208, %s214
          %s216 = smul.addr %s24, 2
          %s217 = sadd.s32 %s212, %s216
          %s218 = smul.addr %s217, 64
          %s219 = scalar_lea.hbm %s0, %s218
          %s220 = sshll.u32 %s211, 4
          %s221 = int_to_ptr.vmem [resolvable:$true] %s220
          %226 = dma.hbm_to_vmem [thread:$0]  %s219, 128, %s221, %s208, 64, 64, 4
        $region32: #{tpu_custom_call.1} parent=27 // pred_fallthru
          _
      $region28: #{tpu_custom_call.1} parent=5 // pred_fallthru
        _
      %p227 = scmp.le.s32.totalorder 1, %s17
      %p228 = scmp.lt.s32.totalorder %s17, 3
      %p229 = pnand %p227, %p228
      %p230 = pneg %p229
      // Predicated region
      $region33: #{tpu_custom_call.1} parent=5 // pred_check
        _
      $region34: #{tpu_custom_call.1} parent=5 // pred_check_branch
        %232 = sbr.rel (%p229) target = $region36
      $region35: #{tpu_custom_call.1} parent=5 // pred_region
        %s233 = ssub.s32 %s17, 1
        %s234 = sand.u32 %s44, 1
        %s235 = scalar_lea.sflag [#allocation3], %s234
        %s236 = sand.u32 %s44, 1
        %s237 = smul.addr %s236, 8
        %s238 = scalar_lea.vmem [#allocation2], %s237
        // Predicated region
        $region37: #{tpu_custom_call.1} parent=35 // pred_check
          %p239 = pneg %p57
        $region38: #{tpu_custom_call.1} parent=35 // pred_check_branch
          %241 = sbr.rel (%p239) target = $region40
        $region39: #{tpu_custom_call.1} parent=35 // pred_region
          %242 = dma.done %s235, 128
        $region40: #{tpu_custom_call.1} parent=35 // pred_fallthru
          _
        // Predicated region
        $region41: #{tpu_custom_call.1} parent=35 // pred_check
          %p243 = pneg %p78
        $region42: #{tpu_custom_call.1} parent=35 // pred_check_branch
          %245 = sbr.rel (%p243) target = $region44
        $region43: #{tpu_custom_call.1} parent=35 // pred_region
          %246 = dma.done [#allocation6], 384
        $region44: #{tpu_custom_call.1} parent=35 // pred_fallthru
          _
        // Predicated region
        $region45: #{tpu_custom_call.1} parent=35 // pred_check
          %p247 = pneg %p125
        $region46: #{tpu_custom_call.1} parent=35 // pred_check_branch
          %249 = sbr.rel (%p247) target = $region48
        $region47: #{tpu_custom_call.1} parent=35 // pred_region
          %250 = dma.done [#allocation6], 256
        $region48: #{tpu_custom_call.1} parent=35 // pred_fallthru
          _
        %s251 = sand.u32 %s44, 1
        %s252 = scalar_lea.sflag [#allocation3], %s251
        %s253 = sand.u32 %s44, 1
        %s254 = smul.addr %s253, 8
        %s255 = scalar_lea.vmem [#allocation2], %s254
        %p256 = pneg %p57
        %p257 = pneg %p54
        %p258 = pneg %p78
        %p259 = pneg %p75
        %p260 = pneg %p99
        %p261 = pneg %p96
        %p262 = pneg %p125
        %p263 = pneg %p122
        %p264 = pneg %p153
        %p265 = pneg %p150
        %s266 = sand.u32 %s140, 1
        %s267 = scalar_lea.sflag [#allocation4], %s266
        %s268 = sand.u32 %s140, 1
        %s269 = smul.addr %s268, 16
        %s270 = scalar_lea.vmem [#allocation8], %s269
        %s271 = smul.u32 2, %s27
        %s272 = smul.u32 2, %s27
        %s273 = smul.u32 2, %s27
        %v275 = vld [vmem:[%s238] sm:$0xf]
        %v276 = vld [vmem:[%s238 + $0x4] sm:$0xf]
        %v277 = vld [vmem:[#allocation5] sm:$0xf]
        %v278 = vld [vmem:[#allocation5 + $0x4] sm:$0xf]
        %v279 = vld [vmem:[#allocation5 + $0x8] sm:$0xf]
        %v280 = vld [vmem:[#allocation5 + $0xc] sm:$0xf]
        %v281 = vld [vmem:[#allocation5 + $0x10] sm:$0xf]
        %v282 = vld [vmem:[#allocation5 + $0x14] sm:$0xf]
        %v283 = vld [vmem:[%s2] sm:$0x1]
        %v285 = vlaneseq
        %v286 = vshrl.u32 %v285, 7
        %v287 = vsub.s32 0, %v286
        %v288 = vrot.slane %v283, %v287
        %v292 = vunpack.c.l.b16 %v275
        %v293 = vunpack.c.l.b16 %v276
        %v294 = vpack.c.b16 %v293, %v292
        %v301 = vunpack.c.l.b16 %v277
        %v302 = vunpack.c.l.b16 %v278
        %v303 = vunpack.c.l.b16 %v279
        %v304 = vunpack.c.l.b16 %v280
        %v305 = vunpack.c.l.b16 %v281
        %v306 = vunpack.c.l.b16 %v282
        %v307 = vpack.c.b16 %v302, %v301
        %v308 = vpack.c.b16 %v304, %v303
        %v309 = vpack.c.b16 %v306, %v305
        %vm313 = vcmask 392192
        %v315 = vsel %vm313, %v294, 0
        %317 = vmatprep.subr.bf16.mxu0 0
        %318 = vmatpush1.bf16.msra.mxu0 0
        %319 = vmatprep.subr.bf16.mxu0 0
        %320 = vmatpush1.bf16.msra.mxu0 0
        %321 = vmatprep.subr.bf16.mxu0 0
        %322 = vmatpush1.bf16.msra.mxu0 0
        %323 = vmatprep.subr.bf16.mxu0 0
        %324 = vmatpush1.bf16.msra.mxu0 0
        %325 = vmatprep.subr.bf16.mxu0 0
        %326 = vmatpush1.bf16.msra.mxu0 0
        %327 = vmatprep.subr.bf16.mxu0 0
        %328 = vmatpush1.bf16.msra.mxu0 %v309
        %329 = vmatprep.subr.bf16.mxu0 0
        %330 = vmatpush1.bf16.msra.mxu0 %v308
        %331 = vmatprep.subr.bf16.mxu0 0
        %332 = vmatpush1.bf16.msra.mxu0 %v307
        %333 = vmatprep.subr.bf16.mxu0 0
        %334 = vmatpush2.bf16.msra.mxu0 0
        %335 = vmatprep.subr.bf16.mxu0 0
        %336 = vmatpush2.bf16.msra.mxu0 0
        %337 = vmatprep.subr.bf16.mxu0 0
        %338 = vmatpush2.bf16.msra.mxu0 0
        %339 = vmatprep.subr.bf16.mxu0 0
        %340 = vmatpush2.bf16.msra.mxu0 0
        %341 = vmatprep.subr.bf16.mxu0 0
        %342 = vmatpush2.bf16.msra.mxu0 0
        %343 = vmatprep.subr.bf16.mxu0 0
        %344 = vmatpush2.bf16.msra.mxu0 0
        %345 = vmatprep.subr.bf16.mxu0 0
        %346 = vmatpush2.bf16.msra.mxu0 0
        %347 = vmatprep.subr.bf16.mxu0 0
        %348 = vmatpush2.bf16.msra.mxu0 0
        %349 = vmatprep.mubr.bf16.mxu0 0
        %350 = vmatmul.mubr.bf16.gmra.mxu0 %v315
        %v351 = vpop.f32.mrf.mxu0
        %v352 = vadd.f32 %v288, %v351
        %v353 = vpop.f32.mrf.mxu0
        %v354 = vpop.f32.mrf.mxu0
        %v355 = vadd.f32 %v288, %v354
        %v356 = vpop.f32.mrf.mxu0
        %357 = vdwg.mxu0
        %v358 = vld [vmem:[#allocation7] sm:$0xff]
        %v359 = vld [vmem:[#allocation7 + $0x8] sm:$0xff]
        %v360 = vadd.f32 %v352, %v358
        %v361 = vadd.f32 %v355, %v359
        %362 = vst [vmem:[%s270] sm:$0xff] %v360
        %363 = vst [vmem:[%s270 + $0x8] sm:$0xff] %v361
        %s364 = sand.u32 %s140, 1
        %s365 = scalar_lea.sflag [#allocation4], %s364
        %s366 = sand.u32 %s140, 1
        %s367 = smul.addr %s366, 16
        %s368 = scalar_lea.vmem [#allocation8], %s367
        // Predicated region
        $region49: #{tpu_custom_call.1} parent=35 // pred_check
          %p369 = pneg %p150
        $region50: #{tpu_custom_call.1} parent=35 // pred_check_branch
          %371 = sbr.rel (%p369) target = $region52
        $region51: #{tpu_custom_call.1} parent=35 // pred_region
          %s372 = smul.u32 2, %s27
          %s374 = ssub.s32 256, 256
          %375 = vsyncadd %s365, %s374
          %s376 = smul.addr %s26, 2
          %s377 = sadd.s32 %s372, %s376
          %s378 = smul.addr %s377, 128
          %s379 = scalar_lea.hbm %s4, %s378
          %s380 = sshll.u32 %s368, 4
          %s381 = int_to_ptr.vmem [resolvable:$true] %s380
          %386 = dma.vmem_to_hbm [thread:$0]  %s381, 256, %s379, %s365, 128, 128, 8
        $region52: #{tpu_custom_call.1} parent=35 // pred_fallthru
          _
      $region36: #{tpu_custom_call.1} parent=5 // pred_fallthru
        _
      %p387 = scmp.le.s32.totalorder 2, %s17
      // Predicated region
      $region53: #{tpu_custom_call.1} parent=5 // pred_check
        %p388 = pneg %p387
      $region54: #{tpu_custom_call.1} parent=5 // pred_check_branch
        %390 = sbr.rel (%p388) target = $region56
      $region55: #{tpu_custom_call.1} parent=5 // pred_region
        %s391 = ssub.s32 %s17, 2
        // Predicated region
        $region57: #{tpu_custom_call.1} parent=55 // pred_check
          %p392 = pneg %p156
        $region58: #{tpu_custom_call.1} parent=55 // pred_check_branch
          %394 = sbr.rel (%p392) target = $region60
        $region59: #{tpu_custom_call.1} parent=55 // pred_region
          %s395 = sand.u32 %s141, 1
          %s396 = scalar_lea.sflag [#allocation4], %s395
          %s397 = sand.u32 %s141, 1
          %s398 = smul.addr %s397, 16
          %s399 = scalar_lea.vmem [#allocation8], %s398
          %400 = dma.done %s396, 256
        $region60: #{tpu_custom_call.1} parent=55 // pred_fallthru
          _
      $region56: #{tpu_custom_call.1} parent=5 // pred_fallthru
        _
    $region6: #{tpu_custom_call.1} parent=1 // loop_footer
      %s21 = sadd.s32 1, %s17
    $region7: #{tpu_custom_call.1} parent=1 // loop_footer_branch
      %16 = sbr.rel target = $region3
    $region8: #{tpu_custom_call.1} parent=1 // loop_exit
      _
    %401 = vsyncpa [#allocation3], 1
    %s402 = scalar_lea.sflag [#allocation3], 1
    %403 = vsyncpa %s402, 1
    %404 = vsyncpa [#allocation6], 1
    %405 = vsyncpa [#allocation4], 1
    %s406 = scalar_lea.sflag [#allocation4], 1
    %407 = vsyncpa %s406, 1

</llo_original>
